<compile_context>
chip_gen: v5e
topology: v5e:2x2
jax: 0.10.0
libtpu: 0.0.40
codegen_flags: <defaults>
</compile_context>

<pallas_src>
import jax
import jax.numpy as jnp
from jax.experimental import pallas as pl
from jax.experimental.pallas import tpu as pltpu


# ----------------------------------------------------------------------------
# Fused kernel: (folded-normalization stem 1x1 conv + ReLU) -> RPN 1x1 conv
# Layout: channels on sublanes, pixels on lanes (lane-dense everywhere).
# ----------------------------------------------------------------------------
def _fused_backbone_rpn_kernel(x_ref, ws_ref, bs_ref, wr_ref, br_ref,
                               feats_ref, rpn_ref):
    # x_ref     : (1, C, BP)        raw image pixels (NCHW slab)
    # ws_ref    : (FEAT, C)         normalization-folded stem weight (transposed)
    # bs_ref    : (FEAT, 1)         normalization-folded stem bias
    # wr_ref    : (RPN_PAD, FEAT)   RPN weight (transposed, channel-padded)
    # br_ref    : (RPN_PAD, 1)      RPN bias (channel-padded)
    # feats_ref : (1, FEAT, BP)
    # rpn_ref   : (1, RPN_PAD, BP)
    x = x_ref[0]                                  # (C, BP)
    w = ws_ref[...]                               # (FEAT, C)
    c_dim = x.shape[0]

    # Stem as C broadcast FMAs on the VPU (K == C == 3: MXU would be ~3% used).
    feats = bs_ref[...] + w[:, 0:1] * x[0:1, :]   # (FEAT, BP)
    for c in range(1, c_dim):
        feats = feats + w[:, c:c + 1] * x[c:c + 1, :]
    feats = jnp.maximum(feats, 0.0)               # ReLU
    feats_ref[0] = feats.astype(feats_ref.dtype)

    # RPN head on the MXU: (RPN_PAD, FEAT) @ (FEAT, BP), lanes stay pixel-dense.
    rpn = jnp.dot(wr_ref[...], feats, preferred_element_type=jnp.float32)
    rpn_ref[0] = (rpn + br_ref[...]).astype(rpn_ref.dtype)


def _choose_block_p(hw, max_block=2048):
    """Lane-dense pixel tile: multiple of 128, big enough for HBM roofline,
    but leaving >=2 grid steps along the pixel axis when possible."""
    half = (hw // 2) // 128 * 128
    return int(max(128, min(max_block, half)))


def fused_backbone_rpn(images, w_stem_t, b_stem_t, w_rpn_t, b_rpn_t,
                       *, max_block_p=2048):
    """images: (N, C, H, W) f32. Weights already normalization-folded,
    transposed to (out_ch, in_ch), biases (out_ch, 1)."""
    N, C, H, W = images.shape
    FEAT = w_stem_t.shape[0]
    RPN_PAD = w_rpn_t.shape[0]
    HW = H * W

    block_p = _choose_block_p(HW, max_block_p)
    hw_pad = pl.cdiv(HW, block_p) * block_p
    x = images.reshape(N, C, HW)
    if hw_pad != HW:
        # Cover the tail rows exactly (grid floor-division bug fix); padded
        # pixel columns produce garbage that is sliced off by the caller.
        x = jnp.pad(x, ((0, 0), (0, 0), (0, hw_pad - HW)))

    grid = (N, hw_pad // block_p)
    feats, rpn = pl.pallas_call(
        _fused_backbone_rpn_kernel,
        out_shape=(
            jax.ShapeDtypeStruct((N, FEAT, hw_pad), jnp.float32),
            jax.ShapeDtypeStruct((N, RPN_PAD, hw_pad), jnp.float32),
        ),
        grid=grid,
        in_specs=[
            pl.BlockSpec((1, C, block_p), lambda n, p: (n, 0, p)),
            pl.BlockSpec((FEAT, C), lambda n, p: (0, 0)),
            pl.BlockSpec((FEAT, 1), lambda n, p: (0, 0)),
            pl.BlockSpec((RPN_PAD, FEAT), lambda n, p: (0, 0)),
            pl.BlockSpec((RPN_PAD, 1), lambda n, p: (0, 0)),
        ],
        out_specs=(
            pl.BlockSpec((1, FEAT, block_p), lambda n, p: (n, 0, p)),
            pl.BlockSpec((1, RPN_PAD, block_p), lambda n, p: (n, 0, p)),
        ),
        compiler_params=pltpu.CompilerParams(
            dimension_semantics=("parallel", "parallel")),
    )(x, w_stem_t, b_stem_t, w_rpn_t, b_rpn_t)
    return feats, rpn


# ----------------------------------------------------------------------------
# GeneralizedRCNN forward (synthetic backbone / RPN heads)
# ----------------------------------------------------------------------------
def generalized_rcnn_forward(images, params):
    """images: (N, C, H, W) float32 in PyTorch NCHW layout."""
    N, C, H, W = images.shape
    HW = H * W
    A = params["num_anchors"]
    FEAT = params["w_stem"].shape[1]
    n_rpn = params["w_rpn"].shape[1]                     # 5 * A

    # preprocess_image fold: stem(normalize(x)) == x @ (w/std) + (b - (m/s) @ w)
    inv_std = 1.0 / params["pixel_std"]                  # (C,)
    w_fold = params["w_stem"] * inv_std[:, None]         # (C, FEAT)
    b_fold = params["b_stem"] - (params["pixel_mean"] * inv_std)[None, :] @ params["w_stem"]
    w_stem_t = jnp.transpose(w_fold)                     # (FEAT, C)
    b_stem_t = jnp.reshape(b_fold, (FEAT, 1))            # (FEAT, 1)
    # TODO(synk): ImageList.from_tensors size_divisibility padding is a pure
    # host-side padding op (no compute); omitted for fixed-size synthetic input.

    # RPN weights transposed + channel-padded to a sublane multiple (15 -> 16).
    rpn_pad = int(pl.cdiv(n_rpn, 8) * 8)
    w_rpn_t = jnp.pad(jnp.transpose(params["w_rpn"]), ((0, rpn_pad - n_rpn), (0, 0)))
    b_rpn_t = jnp.pad(jnp.reshape(params["b_rpn"], (n_rpn, 1)),
                      ((0, rpn_pad - n_rpn), (0, 0)))

    # Fused: normalization-folded stem (backbone) + RPN head, one pallas_call.
    feats, rpn = fused_backbone_rpn(images, w_stem_t, b_stem_t, w_rpn_t, b_rpn_t)

    # Outputs already in NCHW channel-major layout; free reshapes + tiny slices.
    features = feats[:, :, :HW].reshape(N, FEAT, H, W)           # (N, FEAT, H, W)
    objectness = rpn[:, :A, :HW].reshape(N, A, H, W)             # (N, A, H, W)
    deltas = rpn[:, A:5 * A, :HW].reshape(N, 4 * A, H, W)        # (N, 4A, H, W)
    # TODO(synk): anchor generation, delta decoding and NMS proposal selection
    # are data-dependent sorting/selection ops with no clean Pallas equivalent.
    # TODO(synk): roi_heads (ROIAlign + per-region box/mask heads) and the GT
    # matching / loss computation of the training path are not reproduced.

    return {
        "features": features,
        "objectness_logits": objectness,
        "proposal_deltas": deltas,
    }


def init_params(key, C, FEAT, num_anchors):
    k1, k2, k3, k4 = jax.random.split(key, 4)
    return {
        # GeneralizedRCNN constructor defaults (the module's signature really
        # does default pixel_std to the same values as pixel_mean).
        "pixel_mean": jnp.array([123.675, 116.28, 103.53], jnp.float32),
        "pixel_std": jnp.array([123.675, 116.28, 103.53], jnp.float32),
        "w_stem": 0.05 * jax.random.normal(k1, (C, FEAT), jnp.float32),
        "b_stem": 0.01 * jax.random.normal(k2, (1, FEAT), jnp.float32),
        "w_rpn": 0.05 * jax.random.normal(k3, (FEAT, num_anchors * 5), jnp.float32),
        "b_rpn": 0.01 * jax.random.normal(k4, (1, num_anchors * 5), jnp.float32),
        "num_anchors": num_anchors,
    }


if __name__ == "__main__":
    key = jax.random.PRNGKey(0)
    k_img, k_par = jax.random.split(key)

    N, C, H, W = 2, 3, 16, 16          # C=3 matches pixel_mean/std buffers
    FEAT, NUM_ANCHORS = 32, 3

    images = 255.0 * jax.random.uniform(k_img, (N, C, H, W), jnp.float32)
    params = init_params(k_par, C, FEAT, NUM_ANCHORS)

    out = generalized_rcnn_forward(images, params)
    jax.block_until_ready(out)

    # Reference: explicit normalize -> stem(1x1 conv, ReLU) -> RPN(1x1 conv).
    mean = params["pixel_mean"]
    std = params["pixel_std"]
    ref_norm = (images - mean[None, :, None, None]) / std[None, :, None, None]
    ref_flat = jnp.transpose(ref_norm, (0, 2, 3, 1)).reshape(-1, C)
    ref_feats = jnp.maximum(ref_flat @ params["w_stem"] + params["b_stem"], 0.0)
    ref_rpn = ref_feats @ params["w_rpn"] + params["b_rpn"]
    ref_feats_nchw = jnp.transpose(ref_feats.reshape(N, H, W, FEAT), (0, 3, 1, 2))
    ref_rpn_nchw = jnp.transpose(
        ref_rpn.reshape(N, H, W, 5 * NUM_ANCHORS), (0, 3, 1, 2))

    assert jnp.allclose(out["features"], ref_feats_nchw, atol=1e-3, rtol=1e-3)
    assert jnp.allclose(out["objectness_logits"],
                        ref_rpn_nchw[:, :NUM_ANCHORS], atol=1e-3, rtol=1e-3)
    assert jnp.allclose(out["proposal_deltas"],
                        ref_rpn_nchw[:, NUM_ANCHORS:], atol=1e-3, rtol=1e-3)

    print("KERNEL_OK")
</pallas_src>

<mosaic_0001>
module attributes {stable_mosaic.version = 11 : i64} {
  func.func @_fused_backbone_rpn_kernel(%arg0: i32, %arg1: i32, %arg2: memref<1x3x128xf32, #tpu.memory_space<vmem>>, %arg3: memref<32x3xf32, #tpu.memory_space<vmem>>, %arg4: memref<32x1xf32, #tpu.memory_space<vmem>>, %arg5: memref<16x32xf32, #tpu.memory_space<vmem>>, %arg6: memref<16x1xf32, #tpu.memory_space<vmem>>, %arg7: memref<1x32x128xf32, #tpu.memory_space<vmem>>, %arg8: memref<1x16x128xf32, #tpu.memory_space<vmem>>) attributes {dimension_semantics = [#tpu.dimension_semantics<parallel>, #tpu.dimension_semantics<parallel>], iteration_bounds = array<i64: 2, 2>, scalar_prefetch = 0 : i64, scratch_operands = 0 : i64, tpu.core_type = #tpu.core_type<tc>, window_params = [{transform_indices = @transform_0, window_bounds = array<i64: 1, 3, 128>}, {pipeline_mode = #tpu.pipeline_mode<synchronous>, transform_indices = @transform_1, window_bounds = array<i64: 32, 3>}, {pipeline_mode = #tpu.pipeline_mode<synchronous>, transform_indices = @transform_2, window_bounds = array<i64: 32, 1>}, {pipeline_mode = #tpu.pipeline_mode<synchronous>, transform_indices = @transform_3, window_bounds = array<i64: 16, 32>}, {pipeline_mode = #tpu.pipeline_mode<synchronous>, transform_indices = @transform_4, window_bounds = array<i64: 16, 1>}, {transform_indices = @transform_5, window_bounds = array<i64: 1, 32, 128>}, {transform_indices = @transform_6, window_bounds = array<i64: 1, 16, 128>}]} {
    %c0 = arith.constant 0 : index
    %c0_0 = arith.constant 0 : index
    %c0_1 = arith.constant 0 : index
    %0 = vector.load %arg2[%c0, %c0_0, %c0_1] : memref<1x3x128xf32, #tpu.memory_space<vmem>>, vector<1x3x128xf32>
    %1 = vector.shape_cast %0 : vector<1x3x128xf32> to vector<3x128xf32>
    %c0_2 = arith.constant 0 : index
    %c0_3 = arith.constant 0 : index
    %2 = vector.load %arg3[%c0_2, %c0_3] : memref<32x3xf32, #tpu.memory_space<vmem>>, vector<32x3xf32>
    %c0_4 = arith.constant 0 : index
    %c0_5 = arith.constant 0 : index
    %3 = vector.load %arg4[%c0_4, %c0_5] : memref<32x1xf32, #tpu.memory_space<vmem>>, vector<32x1xf32>
    %4 = vector.extract_strided_slice %2 {offsets = [0, 0], sizes = [32, 1], strides = [1, 1]} : vector<32x3xf32> to vector<32x1xf32>
    %5 = vector.extract_strided_slice %1 {offsets = [0, 0], sizes = [1, 128], strides = [1, 1]} : vector<3x128xf32> to vector<1x128xf32>
    %6 = vector.broadcast %4 : vector<32x1xf32> to vector<32x128xf32>
    %7 = vector.broadcast %5 : vector<1x128xf32> to vector<32x128xf32>
    %8 = arith.mulf %6, %7 : vector<32x128xf32>
    %9 = vector.broadcast %3 : vector<32x1xf32> to vector<32x128xf32>
    %10 = arith.addf %9, %8 : vector<32x128xf32>
    %11 = vector.extract_strided_slice %2 {offsets = [0, 1], sizes = [32, 1], strides = [1, 1]} : vector<32x3xf32> to vector<32x1xf32>
    %12 = vector.extract_strided_slice %1 {offsets = [1, 0], sizes = [1, 128], strides = [1, 1]} : vector<3x128xf32> to vector<1x128xf32>
    %13 = vector.broadcast %11 : vector<32x1xf32> to vector<32x128xf32>
    %14 = vector.broadcast %12 : vector<1x128xf32> to vector<32x128xf32>
    %15 = arith.mulf %13, %14 : vector<32x128xf32>
    %16 = arith.addf %10, %15 : vector<32x128xf32>
    %17 = vector.extract_strided_slice %2 {offsets = [0, 2], sizes = [32, 1], strides = [1, 1]} : vector<32x3xf32> to vector<32x1xf32>
    %18 = vector.extract_strided_slice %1 {offsets = [2, 0], sizes = [1, 128], strides = [1, 1]} : vector<3x128xf32> to vector<1x128xf32>
    %19 = vector.broadcast %17 : vector<32x1xf32> to vector<32x128xf32>
    %20 = vector.broadcast %18 : vector<1x128xf32> to vector<32x128xf32>
    %21 = arith.mulf %19, %20 : vector<32x128xf32>
    %22 = arith.addf %16, %21 : vector<32x128xf32>
    %cst = arith.constant 0.000000e+00 : f32
    %23 = vector.broadcast %cst : f32 to vector<32x128xf32>
    %24 = arith.maximumf %22, %23 : vector<32x128xf32>
    %c0_6 = arith.constant 0 : index
    %c0_7 = arith.constant 0 : index
    %c0_8 = arith.constant 0 : index
    %25 = vector.load %arg7[%c0_6, %c0_7, %c0_8] : memref<1x32x128xf32, #tpu.memory_space<vmem>>, vector<1x32x128xf32>
    %26 = vector.shape_cast %25 : vector<1x32x128xf32> to vector<32x128xf32>
    %27 = vector.shape_cast %24 : vector<32x128xf32> to vector<1x32x128xf32>
    tpu.vector_store %arg7[%c0_6, %c0_7, %c0_8], %27 {strides = array<i32>} : memref<1x32x128xf32, #tpu.memory_space<vmem>>, vector<1x32x128xf32>,
    %c0_9 = arith.constant 0 : index
    %c0_10 = arith.constant 0 : index
    %28 = vector.load %arg5[%c0_9, %c0_10] : memref<16x32xf32, #tpu.memory_space<vmem>>, vector<16x32xf32>
    %cst_11 = arith.constant dense<0.000000e+00> : vector<16x128xf32>
    %29 = tpu.matmul %28, %24, %cst_11 {dimension_numbers = #tpu.dot_dimension_numbers<[1], [0], [0], [1], [0, 0, 1, 1], [], []>} : vector<16x32xf32>, vector<32x128xf32>, vector<16x128xf32> -> vector<16x128xf32>
    %c0_12 = arith.constant 0 : index
    %c0_13 = arith.constant 0 : index
    %30 = vector.load %arg6[%c0_12, %c0_13] : memref<16x1xf32, #tpu.memory_space<vmem>>, vector<16x1xf32>
    %31 = vector.broadcast %30 : vector<16x1xf32> to vector<16x128xf32>
    %32 = arith.addf %29, %31 : vector<16x128xf32>
    %c0_14 = arith.constant 0 : index
    %c0_15 = arith.constant 0 : index
    %c0_16 = arith.constant 0 : index
    %33 = vector.load %arg8[%c0_14, %c0_15, %c0_16] : memref<1x16x128xf32, #tpu.memory_space<vmem>>, vector<1x16x128xf32>
    %34 = vector.shape_cast %33 : vector<1x16x128xf32> to vector<16x128xf32>
    %35 = vector.shape_cast %32 : vector<16x128xf32> to vector<1x16x128xf32>
    tpu.vector_store %arg8[%c0_14, %c0_15, %c0_16], %35 {strides = array<i32>} : memref<1x16x128xf32, #tpu.memory_space<vmem>>, vector<1x16x128xf32>,
    return
  }
  func.func @transform_0(%arg0: i32, %arg1: i32) -> (i32, i32, i32) {
    %c0_i32 = arith.constant 0 : i32
    %c0_i32_0 = arith.constant 0 : i32
    return %arg0, %c0_i32, %arg1 : i32, i32, i32
  }
  func.func @transform_1(%arg0: i32, %arg1: i32) -> (i32, i32) {
    %c0_i32 = arith.constant 0 : i32
    %c0_i32_0 = arith.constant 0 : i32
    %c0_i32_1 = arith.constant 0 : i32
    return %c0_i32, %c0_i32_0 : i32, i32
  }
  func.func @transform_2(%arg0: i32, %arg1: i32) -> (i32, i32) {
    %c0_i32 = arith.constant 0 : i32
    %c0_i32_0 = arith.constant 0 : i32
    %c0_i32_1 = arith.constant 0 : i32
    return %c0_i32, %c0_i32_0 : i32, i32
  }
  func.func @transform_3(%arg0: i32, %arg1: i32) -> (i32, i32) {
    %c0_i32 = arith.constant 0 : i32
    %c0_i32_0 = arith.constant 0 : i32
    %c0_i32_1 = arith.constant 0 : i32
    return %c0_i32, %c0_i32_0 : i32, i32
  }
  func.func @transform_4(%arg0: i32, %arg1: i32) -> (i32, i32) {
    %c0_i32 = arith.constant 0 : i32
    %c0_i32_0 = arith.constant 0 : i32
    %c0_i32_1 = arith.constant 0 : i32
    return %c0_i32, %c0_i32_0 : i32, i32
  }
  func.func @transform_5(%arg0: i32, %arg1: i32) -> (i32, i32, i32) {
    %c0_i32 = arith.constant 0 : i32
    %c0_i32_0 = arith.constant 0 : i32
    return %arg0, %c0_i32, %arg1 : i32, i32, i32
  }
  func.func @transform_6(%arg0: i32, %arg1: i32) -> (i32, i32, i32) {
    %c0_i32 = arith.constant 0 : i32
    %c0_i32_0 = arith.constant 0 : i32
    return %arg0, %c0_i32, %arg1 : i32, i32, i32
  }
}

</mosaic_0001>

<llo_original>
// kernel: tpu_custom_call.1
$region0: #{tpu_custom_call.1}
  #allocation0 [shape = 'u32[]', space=smem, size = 0x4, offset = 0x4, fixed_abs, tag = 'smem constant byte address 0x4 - core index']
  #allocation1 [shape = 'u32[72,128]{1,0:T(1,128)}', space=vmem, size = 0x9000, scoped, tag = 'internal scratch']
  %s0 = inlined_call_operand.vmem [shape: f32[2,3,256], index: 0, kind: input, shape index: {}]
  %s1 = inlined_call_operand.vmem [shape: f32[32,3], index: 1, kind: input, shape index: {}]
  %s2 = inlined_call_operand.vmem [shape: f32[32,1], index: 2, kind: input, shape index: {}]
  %s3 = inlined_call_operand.vmem [shape: f32[16,32], index: 3, kind: input, shape index: {}]
  %s4 = inlined_call_operand.vmem [shape: f32[16,1], index: 4, kind: input, shape index: {}]
  %s5 = inlined_call_operand.hbm [shape: f32[2,32,256], index: 5, kind: output, shape index: {0}]
  %s6 = inlined_call_operand.hbm [shape: f32[2,16,256], index: 6, kind: output, shape index: {1}]
  %7 = xla_tuple %s5, %s6
  %s8 = sld [smem:[#allocation0]]
  $region61: #{tpu_custom_call.1} parent=0
    _
  %s10 = ssub.s32 1, %s8
  %s11 = scalar_select 0, %s10, %s8
  $region1: #{tpu_custom_call.1} parent=0
    #allocation2 [shape = 'u8[32768]{0}', space=vmem, size = 0x8000, scoped, tag = 'output window, operand 0']
    #allocation3 [shape = 's32[2]{0}', space=sflag, size = 0x8, scoped, tag = 'scoped memory for tpu_custom_call.1']
    #allocation4 [shape = 'u8[16384]{0}', space=vmem, size = 0x4000, scoped, tag = 'output window, operand 1']
    #allocation5 [shape = 's32[2]{0}', space=sflag, size = 0x8, scoped, tag = 'scoped memory for tpu_custom_call.1']
    %12 = vsyncpa [#allocation3], 0
    %s13 = scalar_lea.sflag [#allocation3], 1
    %14 = vsyncpa %s13, 0
    %15 = vsyncpa [#allocation5], 0
    %s16 = scalar_lea.sflag [#allocation5], 1
    %17 = vsyncpa %s16, 0
    loop: start=0, step=1, limit=6
    $region2: #{tpu_custom_call.1} parent=1 // loop_pre_header
      _
    $region3: #{tpu_custom_call.1} parent=1 // loop_header
      %s19 = sphi 0, %s23
      %p20 = scmp.ge.s32.totalorder %s19, 6
      %s26 = sphi 0, %s38
      %s27 = sphi 0, %s34
      %s28 = sphi 0, %s26
      %s29 = sphi 0, %s27
      %s30 = sphi 0, %s28
      %s31 = sphi 0, %s29
      %s43 = sphi 0, %s45
      %s46 = sphi 0, %s43
      %s47 = sphi 0, %s46
      %s63 = sphi 0, %s47
      %s67 = sphi 0, %s67
      %s69 = sphi 0, %s67
      %s70 = sphi 0, %s69
      %s84 = sphi 0, %s70
      %s88 = sphi 0, %s88
      %s90 = sphi 0, %s88
      %s91 = sphi 0, %s90
      %s105 = sphi 0, %s91
      %s109 = sphi 0, %s109
      %s111 = sphi 0, %s109
      %s112 = sphi 0, %s111
      %s126 = sphi 0, %s112
      %s130 = sphi 0, %s130
      %s132 = sphi 0, %s130
      %s133 = sphi 0, %s132
      %s147 = sphi 0, %s133
      %s155 = sphi 0, %s157
      %s158 = sphi 0, %s155
      %s159 = sphi 0, %s158
      %s175 = sphi 0, %s159
      %s183 = sphi 0, %s185
      %s186 = sphi 0, %s183
      %s187 = sphi 0, %s186
      %s203 = sphi 0, %s187
    $region4: #{tpu_custom_call.1} parent=1 // loop_header_branch
      %22 = sbr.rel (%p20) target = $region8
    $region5: #{tpu_custom_call.1} parent=1 // loop_body
      %s24 = ssub.s32 %s19, 1
      %s25 = ssub.s32 %s19, 2
      %s32 = sadd.s32 1, %s27
      %p33 = scmp.ge.s32.totalorder %s32, 2
      %s34 = scalar_select %p33, 0, %s32
      %s35 = sadd.s32 1, %s26
      %s36 = scalar_select %p33, %s35, %s26
      %p37 = scmp.ge.s32.totalorder %s36, 2
      %s38 = scalar_select %p37, 0, %s36
      %s39 = ssub.s32 %s26, %s38
      %s40 = ssub.s32 %s27, %s34
      %s41 = sor.u32 %s39, %s40
      %p42 = scmp.eq.s32.totalorder %s41, 0
      %s44 = sadd.s32 %s43, 1
      %s45 = scalar_select %p42, %s43, %s44
      %p48 = pneg %p42
      %p49 = scmp.eq.s32.totalorder %s19, 3
      %p50 = por %p48, %p49
      %p51 = scmp.ne.s32.totalorder %s43, %s46
      %p52 = scmp.eq.s32.totalorder %s19, 0
      %p53 = por %p51, %p52
      %p54 = scmp.ne.s32.totalorder %s43, %s46
      %p55 = scmp.eq.s32.totalorder %s24, 3
      %p56 = por %p54, %p55
      %p57 = scmp.ne.s32.totalorder %s46, %s47
      %p58 = scmp.eq.s32.totalorder %s24, 0
      %p59 = por %p57, %p58
      %p60 = scmp.ne.s32.totalorder %s46, %s47
      %p61 = scmp.eq.s32.totalorder %s25, 3
      %p62 = por %p60, %p61
      %p64 = scmp.ne.s32.totalorder %s47, %s63
      %p65 = scmp.eq.s32.totalorder %s25, 0
      %p66 = por %p64, %p65
      %s68 = sadd.s32 %s67, 1
      %p71 = scmp.eq.s32.totalorder %s19, 3
      %p72 = scmp.ne.s32.totalorder %s67, %s69
      %p73 = scmp.eq.s32.totalorder %s19, 0
      %p74 = por %p72, %p73
      %p75 = scmp.ne.s32.totalorder %s67, %s69
      %p76 = scmp.eq.s32.totalorder %s24, 3
      %p77 = por %p75, %p76
      %p78 = scmp.ne.s32.totalorder %s69, %s70
      %p79 = scmp.eq.s32.totalorder %s24, 0
      %p80 = por %p78, %p79
      %p81 = scmp.ne.s32.totalorder %s69, %s70
      %p82 = scmp.eq.s32.totalorder %s25, 3
      %p83 = por %p81, %p82
      %p85 = scmp.ne.s32.totalorder %s70, %s84
      %p86 = scmp.eq.s32.totalorder %s25, 0
      %p87 = por %p85, %p86
      %s89 = sadd.s32 %s88, 1
      %p92 = scmp.eq.s32.totalorder %s19, 3
      %p93 = scmp.ne.s32.totalorder %s88, %s90
      %p94 = scmp.eq.s32.totalorder %s19, 0
      %p95 = por %p93, %p94
      %p96 = scmp.ne.s32.totalorder %s88, %s90
      %p97 = scmp.eq.s32.totalorder %s24, 3
      %p98 = por %p96, %p97
      %p99 = scmp.ne.s32.totalorder %s90, %s91
      %p100 = scmp.eq.s32.totalorder %s24, 0
      %p101 = por %p99, %p100
      %p102 = scmp.ne.s32.totalorder %s90, %s91
      %p103 = scmp.eq.s32.totalorder %s25, 3
      %p104 = por %p102, %p103
      %p106 = scmp.ne.s32.totalorder %s91, %s105
      %p107 = scmp.eq.s32.totalorder %s25, 0
      %p108 = por %p106, %p107
      %s110 = sadd.s32 %s109, 1
      %p113 = scmp.eq.s32.totalorder %s19, 3
      %p114 = scmp.ne.s32.totalorder %s109, %s111
      %p115 = scmp.eq.s32.totalorder %s19, 0
      %p116 = por %p114, %p115
      %p117 = scmp.ne.s32.totalorder %s109, %s111
      %p118 = scmp.eq.s32.totalorder %s24, 3
      %p119 = por %p117, %p118
      %p120 = scmp.ne.s32.totalorder %s111, %s112
      %p121 = scmp.eq.s32.totalorder %s24, 0
      %p122 = por %p120, %p121
      %p123 = scmp.ne.s32.totalorder %s111, %s112
      %p124 = scmp.eq.s32.totalorder %s25, 3
      %p125 = por %p123, %p124
      %p127 = scmp.ne.s32.totalorder %s112, %s126
      %p128 = scmp.eq.s32.totalorder %s25, 0
      %p129 = por %p127, %p128
      %s131 = sadd.s32 %s130, 1
      %p134 = scmp.eq.s32.totalorder %s19, 3
      %p135 = scmp.ne.s32.totalorder %s130, %s132
      %p136 = scmp.eq.s32.totalorder %s19, 0
      %p137 = por %p135, %p136
      %p138 = scmp.ne.s32.totalorder %s130, %s132
      %p139 = scmp.eq.s32.totalorder %s24, 3
      %p140 = por %p138, %p139
      %p141 = scmp.ne.s32.totalorder %s132, %s133
      %p142 = scmp.eq.s32.totalorder %s24, 0
      %p143 = por %p141, %p142
      %p144 = scmp.ne.s32.totalorder %s132, %s133
      %p145 = scmp.eq.s32.totalorder %s25, 3
      %p146 = por %p144, %p145
      %p148 = scmp.ne.s32.totalorder %s133, %s147
      %p149 = scmp.eq.s32.totalorder %s25, 0
      %p150 = por %p148, %p149
      %s151 = ssub.s32 %s26, %s38
      %s152 = ssub.s32 %s27, %s34
      %s153 = sor.u32 %s151, %s152
      %p154 = scmp.eq.s32.totalorder %s153, 0
      %s156 = sadd.s32 %s155, 1
      %s157 = scalar_select %p154, %s155, %s156
      %p160 = pneg %p154
      %p161 = scmp.eq.s32.totalorder %s19, 3
      %p162 = por %p160, %p161
      %p163 = scmp.ne.s32.totalorder %s155, %s158
      %p164 = scmp.eq.s32.totalorder %s19, 0
      %p165 = por %p163, %p164
      %p166 = scmp.ne.s32.totalorder %s155, %s158
      %p167 = scmp.eq.s32.totalorder %s24, 3
      %p168 = por %p166, %p167
      %p169 = scmp.ne.s32.totalorder %s158, %s159
      %p170 = scmp.eq.s32.totalorder %s24, 0
      %p171 = por %p169, %p170
      %p172 = scmp.ne.s32.totalorder %s158, %s159
      %p173 = scmp.eq.s32.totalorder %s25, 3
      %p174 = por %p172, %p173
      %p176 = scmp.ne.s32.totalorder %s159, %s175
      %p177 = scmp.eq.s32.totalorder %s25, 0
      %p178 = por %p176, %p177
      %s179 = ssub.s32 %s26, %s38
      %s180 = ssub.s32 %s27, %s34
      %s181 = sor.u32 %s179, %s180
      %p182 = scmp.eq.s32.totalorder %s181, 0
      %s184 = sadd.s32 %s183, 1
      %s185 = scalar_select %p182, %s183, %s184
      %p188 = pneg %p182
      %p189 = scmp.eq.s32.totalorder %s19, 3
      %p190 = por %p188, %p189
      %p191 = scmp.ne.s32.totalorder %s183, %s186
      %p192 = scmp.eq.s32.totalorder %s19, 0
      %p193 = por %p191, %p192
      %p194 = scmp.ne.s32.totalorder %s183, %s186
      %p195 = scmp.eq.s32.totalorder %s24, 3
      %p196 = por %p194, %p195
      %p197 = scmp.ne.s32.totalorder %s186, %s187
      %p198 = scmp.eq.s32.totalorder %s24, 0
      %p199 = por %p197, %p198
      %p200 = scmp.ne.s32.totalorder %s186, %s187
      %p201 = scmp.eq.s32.totalorder %s25, 3
      %p202 = por %p200, %p201
      %p204 = scmp.ne.s32.totalorder %s187, %s203
      %p205 = scmp.eq.s32.totalorder %s25, 0
      %p206 = por %p204, %p205
      %p207 = scmp.le.s32.totalorder 1, %s19
      %p208 = scmp.lt.s32.totalorder %s19, 5
      %p209 = pnand %p207, %p208
      %p210 = pneg %p209
      // Predicated region
      $region9: #{tpu_custom_call.1} parent=5 // pred_check
        _
      $region10: #{tpu_custom_call.1} parent=5 // pred_check_branch
        %212 = sbr.rel (%p209) target = $region12
      $region11: #{tpu_custom_call.1} parent=5 // pred_region
        %s213 = ssub.s32 %s19, 1
        // Predicated region
        $region13: #{tpu_custom_call.1} parent=11 // pred_check
          %p214 = pneg %p80
        $region14: #{tpu_custom_call.1} parent=11 // pred_check_branch
          %216 = sbr.rel (%p214) target = $region16
        $region15: #{tpu_custom_call.1} parent=11 // pred_region
          _
        $region16: #{tpu_custom_call.1} parent=11 // pred_fallthru
          _
        // Predicated region
        $region17: #{tpu_custom_call.1} parent=11 // pred_check
          %p217 = pneg %p101
        $region18: #{tpu_custom_call.1} parent=11 // pred_check_branch
          %219 = sbr.rel (%p217) target = $region20
        $region19: #{tpu_custom_call.1} parent=11 // pred_region
          _
        $region20: #{tpu_custom_call.1} parent=11 // pred_fallthru
          _
        // Predicated region
        $region21: #{tpu_custom_call.1} parent=11 // pred_check
          %p220 = pneg %p122
        $region22: #{tpu_custom_call.1} parent=11 // pred_check_branch
          %222 = sbr.rel (%p220) target = $region24
        $region23: #{tpu_custom_call.1} parent=11 // pred_region
          _
        $region24: #{tpu_custom_call.1} parent=11 // pred_fallthru
          _
        // Predicated region
        $region25: #{tpu_custom_call.1} parent=11 // pred_check
          %p223 = pneg %p143
        $region26: #{tpu_custom_call.1} parent=11 // pred_check_branch
          %225 = sbr.rel (%p223) target = $region28
        $region27: #{tpu_custom_call.1} parent=11 // pred_region
          _
        $region28: #{tpu_custom_call.1} parent=11 // pred_fallthru
          _
      $region12: #{tpu_custom_call.1} parent=5 // pred_fallthru
        _
      %p226 = scmp.lt.s32.totalorder %s19, 4
      // Predicated region
      $region29: #{tpu_custom_call.1} parent=5 // pred_check
        %p227 = pneg %p226
      $region30: #{tpu_custom_call.1} parent=5 // pred_check_branch
        %229 = sbr.rel (%p227) target = $region32
      $region31: #{tpu_custom_call.1} parent=5 // pred_region
        // Predicated region
        $region33: #{tpu_custom_call.1} parent=31 // pred_check
          %p230 = pneg %p53
        $region34: #{tpu_custom_call.1} parent=31 // pred_check_branch
          %232 = sbr.rel (%p230) target = $region36
        $region35: #{tpu_custom_call.1} parent=31 // pred_region
          %p233 = scmp.lt.s32.totalorder %s26, 1
          %s234 = scalar_select %p233, %s26, 1
          %p235 = scmp.lt.s32.totalorder %s27, 1
          %s236 = scalar_select %p235, %s27, 1
          %s237 = smul.addr %s234, 2
          %s238 = sadd.s32 %s236, %s237
          %s239 = smul.addr %s238, 4
          %s240 = scalar_lea.vmem %s0, %s239
        $region36: #{tpu_custom_call.1} parent=31 // pred_fallthru
          _
      $region32: #{tpu_custom_call.1} parent=5 // pred_fallthru
        _
      %p241 = scmp.le.s32.totalorder 1, %s19
      %p242 = scmp.lt.s32.totalorder %s19, 5
      %p243 = pnand %p241, %p242
      %p244 = pneg %p243
      // Predicated region
      $region37: #{tpu_custom_call.1} parent=5 // pred_check
        _
      $region38: #{tpu_custom_call.1} parent=5 // pred_check_branch
        %246 = sbr.rel (%p243) target = $region40
      $region39: #{tpu_custom_call.1} parent=5 // pred_region
        %s247 = ssub.s32 %s19, 1
        %p248 = scmp.lt.s32.totalorder %s28, 1
        %s249 = scalar_select %p248, %s28, 1
        %p250 = scmp.lt.s32.totalorder %s29, 1
        %s251 = scalar_select %p250, %s29, 1
        %s252 = smul.addr %s249, 2
        %s253 = sadd.s32 %s251, %s252
        %s254 = smul.addr %s253, 4
        %s255 = scalar_lea.vmem %s0, %s254
        %p256 = pneg %p59
        %p257 = pneg %p56
        %p258 = pneg %p80
        %p259 = pneg %p77
        %p260 = pneg %p101
        %p261 = pneg %p98
        %p262 = pneg %p122
        %p263 = pneg %p119
        %p264 = pneg %p143
        %p265 = pneg %p140
        %p266 = pneg %p171
        %p267 = pneg %p168
        %s268 = sand.u32 %s158, 1
        %s269 = scalar_lea.sflag [#allocation3], %s268
        %s270 = sand.u32 %s158, 1
        %s271 = smul.addr %s270, 32
        %s272 = scalar_lea.vmem [#allocation2], %s271
        %p273 = pneg %p199
        %p274 = pneg %p196
        %s275 = sand.u32 %s186, 1
        %s276 = scalar_lea.sflag [#allocation5], %s275
        %s277 = sand.u32 %s186, 1
        %s278 = smul.addr %s277, 16
        %s279 = scalar_lea.vmem [#allocation4], %s278
        %p280 = scmp.lt.s32.totalorder %s28, 1
        %s281 = scalar_select %p280, %s28, 1
        %p282 = scmp.lt.s32.totalorder %s29, 1
        %s283 = scalar_select %p282, %s29, 1
        %s284 = smul.addr %s281, 2
        %s285 = sadd.s32 %s283, %s284
        %s286 = smul.addr %s285, 4
        %s287 = scalar_lea.vmem %s0, %s286
        %v288 = vld [vmem:[%s287] sm:$0x7]
        %v289 = vld [vmem:[%s1] sm:$0xff]
        %v290 = vld [vmem:[%s1 + $0x8] sm:$0xff]
        %v291 = vld [vmem:[%s1 + $0x10] sm:$0xff]
        %v292 = vld [vmem:[%s1 + $0x18] sm:$0xff]
        %v293 = vld [vmem:[%s2] sm:$0xff]
        %v294 = vld [vmem:[%s2 + $0x8] sm:$0xff]
        %v295 = vld [vmem:[%s2 + $0x10] sm:$0xff]
        %v296 = vld [vmem:[%s2 + $0x18] sm:$0xff]
        %298 = vset.pattern.permute.xlu0 0
        %299 = vperm.xlu0 %298, %v289
        %v300 = vpop.permute.xlu0 %299
        %303 = vset.pattern.permute.xlu0 0
        %304 = vperm.xlu0 %303, %v290
        %v305 = vpop.permute.xlu0 %304
        %308 = vset.pattern.permute.xlu0 0
        %309 = vperm.xlu0 %308, %v291
        %v310 = vpop.permute.xlu0 %309
        %313 = vset.pattern.permute.xlu0 0
        %314 = vperm.xlu0 %313, %v292
        %v315 = vpop.permute.xlu0 %314
        %v317 = vperm.slane %v288, 0
        %v318 = vmul.f32 %v300, %v317
        %v319 = vmul.f32 %v305, %v317
        %v320 = vmul.f32 %v310, %v317
        %v321 = vmul.f32 %v315, %v317
        %323 = vset.pattern.permute.xlu0 0
        %324 = vperm.xlu0 %323, %v293
        %v325 = vpop.permute.xlu0 %324
        %328 = vset.pattern.permute.xlu0 0
        %329 = vperm.xlu0 %328, %v294
        %v330 = vpop.permute.xlu0 %329
        %333 = vset.pattern.permute.xlu0 0
        %334 = vperm.xlu0 %333, %v295
        %v335 = vpop.permute.xlu0 %334
        %338 = vset.pattern.permute.xlu0 0
        %339 = vperm.xlu0 %338, %v296
        %v340 = vpop.permute.xlu0 %339
        %v342 = vadd.f32 %v325, %v318
        %v343 = vadd.f32 %v330, %v319
        %v344 = vadd.f32 %v335, %v320
        %v345 = vadd.f32 %v340, %v321
        %346 = vset.pattern.permute.xlu0 1
        %347 = vperm.xlu0 %346, %v289
        %v348 = vpop.permute.xlu0 %347
        %350 = vset.pattern.permute.xlu0 1
        %351 = vperm.xlu0 %350, %v290
        %v352 = vpop.permute.xlu0 %351
        %354 = vset.pattern.permute.xlu0 1
        %355 = vperm.xlu0 %354, %v291
        %v356 = vpop.permute.xlu0 %355
        %358 = vset.pattern.permute.xlu0 1
        %359 = vperm.xlu0 %358, %v292
        %v360 = vpop.permute.xlu0 %359
        %v362 = vperm.slane %v288, 1
        %v363 = vmul.f32 %v348, %v362
        %v364 = vmul.f32 %v352, %v362
        %v365 = vmul.f32 %v356, %v362
        %v366 = vmul.f32 %v360, %v362
        %v367 = vadd.f32 %v342, %v363
        %v368 = vadd.f32 %v343, %v364
        %v369 = vadd.f32 %v344, %v365
        %v370 = vadd.f32 %v345, %v366
        %371 = vset.pattern.permute.xlu0 2
        %372 = vperm.xlu0 %371, %v289
        %v373 = vpop.permute.xlu0 %372
        %375 = vset.pattern.permute.xlu0 2
        %376 = vperm.xlu0 %375, %v290
        %v377 = vpop.permute.xlu0 %376
        %379 = vset.pattern.permute.xlu0 2
        %380 = vperm.xlu0 %379, %v291
        %v381 = vpop.permute.xlu0 %380
        %383 = vset.pattern.permute.xlu0 2
        %384 = vperm.xlu0 %383, %v292
        %v385 = vpop.permute.xlu0 %384
        %v387 = vperm.slane %v288, 2
        %v388 = vmul.f32 %v373, %v387
        %v389 = vmul.f32 %v377, %v387
        %v390 = vmul.f32 %v381, %v387
        %v391 = vmul.f32 %v385, %v387
        %v392 = vadd.f32 %v367, %v388
        %v393 = vadd.f32 %v368, %v389
        %v394 = vadd.f32 %v369, %v390
        %v395 = vadd.f32 %v370, %v391
        %v396 = vmax.f32 %v392, 0.0
        %v397 = vmax.f32 %v393, 0.0
        %v398 = vmax.f32 %v394, 0.0
        %v399 = vmax.f32 %v395, 0.0
        %400 = vst [vmem:[%s272] sm:$0xff] %v396
        %401 = vst [vmem:[%s272 + $0x8] sm:$0xff] %v397
        %402 = vst [vmem:[%s272 + $0x10] sm:$0xff] %v398
        %403 = vst [vmem:[%s272 + $0x18] sm:$0xff] %v399
        %v404 = vld [vmem:[%s3] sm:$0xff]
        %v405 = vld [vmem:[%s3 + $0x8] sm:$0xff]
        %v406 = vld [vmem:[%s4] sm:$0xff]
        %v407 = vld [vmem:[%s4 + $0x8] sm:$0xff]
        %409 = vset.pattern.permute.xlu0 0
        %410 = vperm.xlu0 %409, %v406
        %v411 = vpop.permute.xlu0 %410
        %414 = vset.pattern.permute.xlu0 0
        %415 = vperm.xlu0 %414, %v407
        %v416 = vpop.permute.xlu0 %415
        %vm418 = vcmask 261120
        %v420 = vsel %vm418, %v404, 0
        %v423 = vsel %vm418, %v405, 0
        %425 = vmatpush.msra.mxu0 0.0
        %426 = vmatpush.msra.mxu0 0.0
        %427 = vmatpush.msra.mxu0 0.0
        %428 = vmatpush.msra.mxu0 0.0
        %429 = vmatpush.msra.mxu0 0.0
        %430 = vmatpush.msra.mxu0 0.0
        %431 = vmatpush.msra.mxu0 0.0
        %432 = vmatpush.msra.mxu0 0.0
        %433 = vmatpush.msra.mxu0 0.0
        %434 = vmatpush.msra.mxu0 0.0
        %435 = vmatpush.msra.mxu0 0.0
        %436 = vmatpush.msra.mxu0 0.0
        %437 = vmatpush.msra.mxu0 %v399
        %438 = vmatpush.msra.mxu0 %v398
        %439 = vmatpush.msra.mxu0 %v397
        %440 = vmatpush.msra.mxu0 %v396
        %441 = vmatmul.f32.gmra.mxu0 %v420
        %v442 = vpop.f32.mrf.mxu0
        %v443 = vadd.f32 %v411, %v442
        %444 = vmatmul.f32.gmra.mxu0 %v423
        %v445 = vpop.f32.mrf.mxu0
        %v446 = vadd.f32 %v416, %v445
        %447 = vdwg.mxu0
        %448 = vst [vmem:[%s279] sm:$0xff] %v443
        %449 = vst [vmem:[%s279 + $0x8] sm:$0xff] %v446
        %s450 = sand.u32 %s158, 1
        %s451 = scalar_lea.sflag [#allocation3], %s450
        %s452 = sand.u32 %s158, 1
        %s453 = smul.addr %s452, 32
        %s454 = scalar_lea.vmem [#allocation2], %s453
        %s455 = sand.u32 %s186, 1
        %s456 = scalar_lea.sflag [#allocation5], %s455
        %s457 = sand.u32 %s186, 1
        %s458 = smul.addr %s457, 16
        %s459 = scalar_lea.vmem [#allocation4], %s458
        // Predicated region
        $region41: #{tpu_custom_call.1} parent=39 // pred_check
          %p460 = pneg %p168
        $region42: #{tpu_custom_call.1} parent=39 // pred_check_branch
          %462 = sbr.rel (%p460) target = $region44
        $region43: #{tpu_custom_call.1} parent=39 // pred_region
          %464 = vsyncadd %s451, 0
          %s465 = smul.addr %s28, 8
          %s466 = sadd.s32 %s29, %s465
          %s467 = smul.addr %s466, 8
          %s468 = scalar_lea.hbm %s5, %s467
          %s469 = sshll.u32 %s454, 4
          %s470 = int_to_ptr.vmem [resolvable:$true] %s469
          %s471 = sshll.u32 %s468, 4
          %s472 = int_to_ptr.hbm [resolvable:$true] %s471
          %477 = dma.vmem_to_hbm [thread:$0]  %s470, 512, %s472, %s451, 128, 256, 8
        $region44: #{tpu_custom_call.1} parent=39 // pred_fallthru
          _
        // Predicated region
        $region45: #{tpu_custom_call.1} parent=39 // pred_check
          %p478 = pneg %p196
        $region46: #{tpu_custom_call.1} parent=39 // pred_check_branch
          %480 = sbr.rel (%p478) target = $region48
        $region47: #{tpu_custom_call.1} parent=39 // pred_region
          %482 = vsyncadd %s456, 0
          %s483 = smul.addr %s28, 4
          %s484 = sadd.s32 %s29, %s483
          %s485 = smul.addr %s484, 8
          %s486 = scalar_lea.hbm %s6, %s485
          %s487 = sshll.u32 %s459, 4
          %s488 = int_to_ptr.vmem [resolvable:$true] %s487
          %s489 = sshll.u32 %s486, 4
          %s490 = int_to_ptr.hbm [resolvable:$true] %s489
          %495 = dma.vmem_to_hbm [thread:$0]  %s488, 256, %s490, %s456, 128, 256, 8
        $region48: #{tpu_custom_call.1} parent=39 // pred_fallthru
          _
      $region40: #{tpu_custom_call.1} parent=5 // pred_fallthru
        _
      %p496 = scmp.le.s32.totalorder 2, %s19
      // Predicated region
      $region49: #{tpu_custom_call.1} parent=5 // pred_check
        %p497 = pneg %p496
      $region50: #{tpu_custom_call.1} parent=5 // pred_check_branch
        %499 = sbr.rel (%p497) target = $region52
      $region51: #{tpu_custom_call.1} parent=5 // pred_region
        %s500 = ssub.s32 %s19, 2
        // Predicated region
        $region53: #{tpu_custom_call.1} parent=51 // pred_check
          %p501 = pneg %p174
        $region54: #{tpu_custom_call.1} parent=51 // pred_check_branch
          %503 = sbr.rel (%p501) target = $region56
        $region55: #{tpu_custom_call.1} parent=51 // pred_region
          %s504 = sand.u32 %s159, 1
          %s505 = scalar_lea.sflag [#allocation3], %s504
          %s506 = sand.u32 %s159, 1
          %s507 = smul.addr %s506, 32
          %s508 = scalar_lea.vmem [#allocation2], %s507
          %510 = dma.done %s505, 512
        $region56: #{tpu_custom_call.1} parent=51 // pred_fallthru
          _
        // Predicated region
        $region57: #{tpu_custom_call.1} parent=51 // pred_check
          %p511 = pneg %p202
        $region58: #{tpu_custom_call.1} parent=51 // pred_check_branch
          %513 = sbr.rel (%p511) target = $region60
        $region59: #{tpu_custom_call.1} parent=51 // pred_region
          %s514 = sand.u32 %s187, 1
          %s515 = scalar_lea.sflag [#allocation5], %s514
          %s516 = sand.u32 %s187, 1
          %s517 = smul.addr %s516, 16
          %s518 = scalar_lea.vmem [#allocation4], %s517
          %520 = dma.done %s515, 256
        $region60: #{tpu_custom_call.1} parent=51 // pred_fallthru
          _
      $region52: #{tpu_custom_call.1} parent=5 // pred_fallthru
        _
    $region6: #{tpu_custom_call.1} parent=1 // loop_footer
      %s23 = sadd.s32 1, %s19
    $region7: #{tpu_custom_call.1} parent=1 // loop_footer_branch
      %18 = sbr.rel target = $region3
    $region8: #{tpu_custom_call.1} parent=1 // loop_exit
      _
    %521 = vsyncpa [#allocation3], 1
    %s522 = scalar_lea.sflag [#allocation3], 1
    %523 = vsyncpa %s522, 1
    %524 = vsyncpa [#allocation5], 1
    %s525 = scalar_lea.sflag [#allocation5], 1
    %526 = vsyncpa %s525, 1

</llo_original>
